<compile_context>
chip_gen: v6e
topology: v6e:2x2x1
jax: 0.10.0
libtpu: 0.0.40
codegen_flags: <defaults>
</compile_context>

<pallas_src>
import math

import jax
import jax.numpy as jnp
from jax.experimental import pallas as pl
from jax.experimental.pallas import tpu as pltpu

_LANE = 128      # vreg lane width (last dim)
_SUBLANE = 8     # vreg sublanes (second-to-last dim, f32)


def _round_up(x, m):
    return ((x + m - 1) // m) * m


def _pick_row_tile(n_rows, target):
    """Power-of-two row tile <= target; keep >= 2 row tiles when the problem
    allows so the 'parallel' axis can shard across v7x's two TensorCores."""
    limit = max(_round_up(n_rows, _SUBLANE), _SUBLANE)
    tile = _SUBLANE
    while tile * 2 <= target and tile * 2 <= limit:
        tile *= 2
    while tile > _SUBLANE and pl.cdiv(n_rows, tile) < 2:
        tile //= 2
    return tile


def _pick_k_tile(n_cols, target):
    """Power-of-two contraction tile, multiple of 128 (lane axis of adj)."""
    limit = max(_round_up(n_cols, _LANE), _LANE)
    tile = _LANE
    while tile * 2 <= target and tile * 2 <= limit:
        tile *= 2
    return tile


def _feat_weight_kernel(feat_ref, w_ref, fw_ref):
    # Prologue: FW = features @ weight_padded  (row-tiled, lane-dense output)
    fw_ref[...] = jnp.dot(
        feat_ref[...], w_ref[...], preferred_element_type=jnp.float32
    ).astype(fw_ref.dtype)


def _adj_fw_kernel(adj_ref, fw_ref, out_ref, acc_ref):
    # Main: out_tile = sum_k adj[i, k-slab] @ FW[k-slab, :]
    k = pl.program_id(1)

    @pl.when(k == 0)
    def _():
        acc_ref[...] = jnp.zeros_like(acc_ref)

    acc_ref[...] += jnp.dot(
        adj_ref[...], fw_ref[...], preferred_element_type=jnp.float32)

    @pl.when(k == pl.num_programs(1) - 1)
    def _():
        out_ref[...] = acc_ref[...].astype(out_ref.dtype)


def gcn_conv(adj, features, weight, *, tm=None, tk=None, compute_dtype=None):
    """GCNConv forward: adj @ features @ weight, as two fused Pallas kernels.

    compute_dtype=jnp.bfloat16 optionally casts the matmul operands (f32
    accumulation is kept); default keeps full float32 semantics.
    """
    n, n2 = adj.shape
    assert n == n2 and features.shape[0] == n
    in_size = features.shape[1]
    assert weight.shape[0] == in_size
    out_size = weight.shape[1]
    out_dtype = features.dtype
    cdt = out_dtype if compute_dtype is None else compute_dtype

    # Lane-dense output slab (multiple of 128); logical columns sliced later.
    out_pad = _round_up(out_size, _LANE)

    # Tile sizes (power-of-two; parallel grid axis kept >= 2 when possible).
    if tm is None:
        tm = _pick_row_tile(n, 256)
    if tk is None:
        tk = _pick_k_tile(n, 512)
    m_pad = _round_up(n, tm)
    k_pad = _round_up(n, tk)

    # Zero-padding rows/cols does not change the product; sliced off at the end.
    adj_p = adj if (m_pad, k_pad) == (n, n) else jnp.pad(
        adj, ((0, m_pad - n), (0, k_pad - n)))
    feat_p = features if k_pad == n else jnp.pad(
        features, ((0, k_pad - n), (0, 0)))
    w_p = weight if out_pad == out_size else jnp.pad(
        weight, ((0, 0), (0, out_pad - out_size)))

    if compute_dtype is not None:
        adj_p = adj_p.astype(compute_dtype)
        feat_p = feat_p.astype(compute_dtype)
        w_p = w_p.astype(compute_dtype)

    # ---- Kernel 1 (prologue): FW = features @ weight_padded ----------------
    tmf = min(256, tk)                      # power of two dividing k_pad
    while tmf > _SUBLANE and k_pad // tmf < 2:
        tmf //= 2
    fw = pl.pallas_call(
        _feat_weight_kernel,
        out_shape=jax.ShapeDtypeStruct((k_pad, out_pad), cdt),
        grid_spec=pltpu.PrefetchScalarGridSpec(
            num_scalar_prefetch=0,
            grid=(k_pad // tmf,),
            in_specs=[
                pl.BlockSpec((tmf, in_size), lambda i: (i, 0)),   # feature rows
                pl.BlockSpec((in_size, out_pad), lambda i: (0, 0)),  # full weight
            ],
            out_specs=pl.BlockSpec((tmf, out_pad), lambda i: (i, 0)),
        ),
        compiler_params=pltpu.CompilerParams(
            dimension_semantics=("parallel",)),
    )(feat_p, w_p)

    # ---- Kernel 2 (main): out = adj @ FW -----------------------------------
    itemsize = jnp.dtype(cdt).itemsize
    vmem_need = (2 * tm * tk * itemsize            # adj tile, double-buffered
                 + 2 * tk * out_pad * itemsize     # FW K-slab, double-buffered
                 + 2 * tm * out_pad * itemsize     # output tile
                 + tm * out_pad * 4)               # f32 accumulator scratch
    vmem_limit = int(min(max(4 * vmem_need, 16 * 1024 * 1024),
                         48 * 1024 * 1024))        # fits v7x's 64 MiB VMEM

    out_p = pl.pallas_call(
        _adj_fw_kernel,
        out_shape=jax.ShapeDtypeStruct((m_pad, out_pad), out_dtype),
        grid_spec=pltpu.PrefetchScalarGridSpec(
            num_scalar_prefetch=0,
            grid=(m_pad // tm, k_pad // tk),
            in_specs=[
                pl.BlockSpec((tm, tk), lambda i, k: (i, k)),        # adj tile
                pl.BlockSpec((tk, out_pad), lambda i, k: (k, 0)),   # FW K-slab
            ],
            out_specs=pl.BlockSpec((tm, out_pad), lambda i, k: (i, 0)),
            scratch_shapes=[pltpu.VMEM((tm, out_pad), jnp.float32)],
        ),
        compiler_params=pltpu.CompilerParams(
            dimension_semantics=("parallel", "arbitrary"),
            vmem_limit_bytes=vmem_limit),
        cost_estimate=pl.CostEstimate(
            flops=2 * m_pad * k_pad * out_pad,
            transcendentals=0,
            bytes_accessed=(m_pad * k_pad + k_pad * out_pad
                            + m_pad * out_pad) * itemsize),
    )(adj_p, fw)

    # Drop row padding and lane padding to recover the logical output shape.
    return out_p[:n, :out_size]


def xavier_uniform(key, in_size, out_size, gain=1.414, dtype=jnp.float32):
    # Matches nn.init.xavier_uniform_(weight, gain=1.414)
    bound = gain * math.sqrt(6.0 / (in_size + out_size))
    return jax.random.uniform(key, (in_size, out_size), dtype,
                              minval=-bound, maxval=bound)


if __name__ == "__main__":
    key = jax.random.PRNGKey(0)
    k_adj, k_feat, k_w = jax.random.split(key, 3)

    N, IN_SIZE, OUT_SIZE = 128, 64, 32

    # Deterministic synthetic inputs: row-normalized "adjacency" + features.
    adj = jax.random.uniform(k_adj, (N, N), jnp.float32)
    adj = adj / jnp.sum(adj, axis=-1, keepdims=True)
    features = jax.random.normal(k_feat, (N, IN_SIZE), jnp.float32)
    weight = xavier_uniform(k_w, IN_SIZE, OUT_SIZE)

    out = gcn_conv(adj, features, weight)
    out = jax.block_until_ready(out)

    # Reference: mathematically identical to the PyTorch (adj@features)@weight.
    # We compare against the kernel's (FLOP-saving) association adj@(F@W) so
    # the check is independent of the backend's default matmul-precision mode;
    # tolerance leaves headroom for TPU default-precision matmul passes.
    ref = adj @ (features @ weight)
    assert out.shape == (N, OUT_SIZE)
    assert jnp.allclose(out, ref, atol=1e-3, rtol=1e-3), "mismatch vs reference"

    print("KERNEL_OK")
</pallas_src>

<mosaic_0001>
module attributes {stable_mosaic.version = 11 : i64} {
  func.func @_feat_weight_kernel(%arg0: i32, %arg1: memref<64x64xf32, #tpu.memory_space<vmem>>, %arg2: memref<64x128xf32, #tpu.memory_space<vmem>>, %arg3: memref<64x128xf32, #tpu.memory_space<vmem>>) attributes {dimension_semantics = [#tpu.dimension_semantics<parallel>], iteration_bounds = array<i64: 2>, scalar_prefetch = 0 : i64, scratch_operands = 0 : i64, tpu.core_type = #tpu.core_type<tc>, window_params = [{transform_indices = @transform_0, window_bounds = array<i64: 64, 64>}, {pipeline_mode = #tpu.pipeline_mode<synchronous>, transform_indices = @transform_1, window_bounds = array<i64: 64, 128>}, {transform_indices = @transform_2, window_bounds = array<i64: 64, 128>}]} {
    %c0 = arith.constant 0 : index
    %c0_0 = arith.constant 0 : index
    %0 = vector.load %arg1[%c0, %c0_0] : memref<64x64xf32, #tpu.memory_space<vmem>>, vector<64x64xf32>
    %c0_1 = arith.constant 0 : index
    %c0_2 = arith.constant 0 : index
    %1 = vector.load %arg2[%c0_1, %c0_2] : memref<64x128xf32, #tpu.memory_space<vmem>>, vector<64x128xf32>
    %cst = arith.constant dense<0.000000e+00> : vector<64x128xf32>
    %2 = tpu.matmul %0, %1, %cst {dimension_numbers = #tpu.dot_dimension_numbers<[1], [0], [0], [1], [0, 0, 1, 1], [], []>} : vector<64x64xf32>, vector<64x128xf32>, vector<64x128xf32> -> vector<64x128xf32>
    %c0_3 = arith.constant 0 : index
    %c0_4 = arith.constant 0 : index
    %3 = vector.load %arg3[%c0_3, %c0_4] : memref<64x128xf32, #tpu.memory_space<vmem>>, vector<64x128xf32>
    tpu.vector_store %arg3[%c0_3, %c0_4], %2 {strides = array<i32>} : memref<64x128xf32, #tpu.memory_space<vmem>>, vector<64x128xf32>,
    return
  }
  func.func @transform_0(%arg0: i32) -> (i32, i32) {
    %c0_i32 = arith.constant 0 : i32
    %c0_i32_0 = arith.constant 0 : i32
    return %arg0, %c0_i32 : i32, i32
  }
  func.func @transform_1(%arg0: i32) -> (i32, i32) {
    %c0_i32 = arith.constant 0 : i32
    %c0_i32_0 = arith.constant 0 : i32
    %c0_i32_1 = arith.constant 0 : i32
    return %c0_i32, %c0_i32_0 : i32, i32
  }
  func.func @transform_2(%arg0: i32) -> (i32, i32) {
    %c0_i32 = arith.constant 0 : i32
    %c0_i32_0 = arith.constant 0 : i32
    return %arg0, %c0_i32 : i32, i32
  }
}

</mosaic_0001>

<llo_original>
// kernel: tpu_custom_call.1
$region0: #{tpu_custom_call.1}
  #allocation0 [shape = 'u32[]', space=smem, size = 0x4, offset = 0x4, fixed_abs, tag = 'smem constant byte address 0x4 - core index']
  #allocation1 [shape = 'u32[144,128]{1,0:T(1,128)}', space=vmem, size = 0x12000, scoped, tag = 'internal scratch']
  %s0 = inlined_call_operand.vmem [shape: f32[128,64], index: 0, kind: input, shape index: {}]
  %s1 = inlined_call_operand.vmem [shape: f32[64,128], index: 1, kind: input, shape index: {}]
  %s2 = inlined_call_operand.hbm [shape: f32[128,128], index: 2, kind: output, shape index: {}]
  %s3 = sld [smem:[#allocation0]]
  $region41: #{tpu_custom_call.1} parent=0
    _
  %s5 = ssub.s32 1, %s3
  %s6 = scalar_select 0, %s5, %s3
  $region1: #{tpu_custom_call.1} parent=0
    #allocation2 [shape = 'u8[65536]{0}', space=vmem, size = 0x10000, scoped, tag = 'output window, operand 0']
    #allocation3 [shape = 's32[2]{0}', space=sflag, size = 0x8, scoped, tag = 'scoped memory for tpu_custom_call.1']
    %7 = vsyncpa [#allocation3], 0
    %s8 = scalar_lea.sflag [#allocation3], 1
    %9 = vsyncpa %s8, 0
    loop: start=0, step=1, limit=4
    $region2: #{tpu_custom_call.1} parent=1 // loop_pre_header
      _
    $region3: #{tpu_custom_call.1} parent=1 // loop_header
      %s11 = sphi 0, %s15
      %p12 = scmp.ge.s32.totalorder %s11, 4
      %s21 = sphi 0, %s23
      %s24 = sphi 0, %s21
      %s25 = sphi 0, %s24
      %s41 = sphi 0, %s25
      %s45 = sphi 0, %s45
      %s47 = sphi 0, %s45
      %s48 = sphi 0, %s47
      %s62 = sphi 0, %s48
      %s68 = sphi 0, %s70
      %s71 = sphi 0, %s68
      %s72 = sphi 0, %s71
      %s88 = sphi 0, %s72
    $region4: #{tpu_custom_call.1} parent=1 // loop_header_branch
      %14 = sbr.rel (%p12) target = $region8
    $region5: #{tpu_custom_call.1} parent=1 // loop_body
      %s16 = ssub.s32 %s11, 1
      %s17 = ssub.s32 %s11, 2
      %s18 = sadd.s32 %s11, 1
      %s19 = ssub.s32 %s11, %s18
      %p20 = scmp.eq.s32.totalorder %s19, 0
      %s22 = sadd.s32 %s21, 1
      %s23 = scalar_select %p20, %s21, %s22
      %p26 = pneg %p20
      %p27 = scmp.eq.s32.totalorder %s11, 1
      %p28 = por %p26, %p27
      %p29 = scmp.ne.s32.totalorder %s21, %s24
      %p30 = scmp.eq.s32.totalorder %s11, 0
      %p31 = por %p29, %p30
      %p32 = scmp.ne.s32.totalorder %s21, %s24
      %p33 = scmp.eq.s32.totalorder %s16, 1
      %p34 = por %p32, %p33
      %p35 = scmp.ne.s32.totalorder %s24, %s25
      %p36 = scmp.eq.s32.totalorder %s16, 0
      %p37 = por %p35, %p36
      %p38 = scmp.ne.s32.totalorder %s24, %s25
      %p39 = scmp.eq.s32.totalorder %s17, 1
      %p40 = por %p38, %p39
      %p42 = scmp.ne.s32.totalorder %s25, %s41
      %p43 = scmp.eq.s32.totalorder %s17, 0
      %p44 = por %p42, %p43
      %s46 = sadd.s32 %s45, 1
      %p49 = scmp.eq.s32.totalorder %s11, 1
      %p50 = scmp.ne.s32.totalorder %s45, %s47
      %p51 = scmp.eq.s32.totalorder %s11, 0
      %p52 = por %p50, %p51
      %p53 = scmp.ne.s32.totalorder %s45, %s47
      %p54 = scmp.eq.s32.totalorder %s16, 1
      %p55 = por %p53, %p54
      %p56 = scmp.ne.s32.totalorder %s47, %s48
      %p57 = scmp.eq.s32.totalorder %s16, 0
      %p58 = por %p56, %p57
      %p59 = scmp.ne.s32.totalorder %s47, %s48
      %p60 = scmp.eq.s32.totalorder %s17, 1
      %p61 = por %p59, %p60
      %p63 = scmp.ne.s32.totalorder %s48, %s62
      %p64 = scmp.eq.s32.totalorder %s17, 0
      %p65 = por %p63, %p64
      %s66 = ssub.s32 %s11, %s18
      %p67 = scmp.eq.s32.totalorder %s66, 0
      %s69 = sadd.s32 %s68, 1
      %s70 = scalar_select %p67, %s68, %s69
      %p73 = pneg %p67
      %p74 = scmp.eq.s32.totalorder %s11, 1
      %p75 = por %p73, %p74
      %p76 = scmp.ne.s32.totalorder %s68, %s71
      %p77 = scmp.eq.s32.totalorder %s11, 0
      %p78 = por %p76, %p77
      %p79 = scmp.ne.s32.totalorder %s68, %s71
      %p80 = scmp.eq.s32.totalorder %s16, 1
      %p81 = por %p79, %p80
      %p82 = scmp.ne.s32.totalorder %s71, %s72
      %p83 = scmp.eq.s32.totalorder %s16, 0
      %p84 = por %p82, %p83
      %p85 = scmp.ne.s32.totalorder %s71, %s72
      %p86 = scmp.eq.s32.totalorder %s17, 1
      %p87 = por %p85, %p86
      %p89 = scmp.ne.s32.totalorder %s72, %s88
      %p90 = scmp.eq.s32.totalorder %s17, 0
      %p91 = por %p89, %p90
      %p92 = scmp.le.s32.totalorder 1, %s11
      %p93 = scmp.lt.s32.totalorder %s11, 3
      %p94 = pnand %p92, %p93
      %p95 = pneg %p94
      // Predicated region
      $region9: #{tpu_custom_call.1} parent=5 // pred_check
        _
      $region10: #{tpu_custom_call.1} parent=5 // pred_check_branch
        %97 = sbr.rel (%p94) target = $region12
      $region11: #{tpu_custom_call.1} parent=5 // pred_region
        %s98 = ssub.s32 %s11, 1
        // Predicated region
        $region13: #{tpu_custom_call.1} parent=11 // pred_check
          %p99 = pneg %p58
        $region14: #{tpu_custom_call.1} parent=11 // pred_check_branch
          %101 = sbr.rel (%p99) target = $region16
        $region15: #{tpu_custom_call.1} parent=11 // pred_region
          _
        $region16: #{tpu_custom_call.1} parent=11 // pred_fallthru
          _
      $region12: #{tpu_custom_call.1} parent=5 // pred_fallthru
        _
      %p102 = scmp.lt.s32.totalorder %s11, 2
      // Predicated region
      $region17: #{tpu_custom_call.1} parent=5 // pred_check
        %p103 = pneg %p102
      $region18: #{tpu_custom_call.1} parent=5 // pred_check_branch
        %105 = sbr.rel (%p103) target = $region20
      $region19: #{tpu_custom_call.1} parent=5 // pred_region
        // Predicated region
        $region21: #{tpu_custom_call.1} parent=19 // pred_check
          %p106 = pneg %p31
        $region22: #{tpu_custom_call.1} parent=19 // pred_check_branch
          %108 = sbr.rel (%p106) target = $region24
        $region23: #{tpu_custom_call.1} parent=19 // pred_region
          %s109 = smul.u32 8, %s11
          %p110 = scmp.lt.s32.totalorder %s109, 15
          %s111 = scalar_select %p110, %s109, 15
          %s112 = smul.addr %s111, 8
          %s113 = scalar_lea.vmem %s0, %s112
          %s114 = smul.u32 8, %s11
        $region24: #{tpu_custom_call.1} parent=19 // pred_fallthru
          _
      $region20: #{tpu_custom_call.1} parent=5 // pred_fallthru
        _
      %p115 = scmp.le.s32.totalorder 1, %s11
      %p116 = scmp.lt.s32.totalorder %s11, 3
      %p117 = pnand %p115, %p116
      %p118 = pneg %p117
      // Predicated region
      $region25: #{tpu_custom_call.1} parent=5 // pred_check
        _
      $region26: #{tpu_custom_call.1} parent=5 // pred_check_branch
        %120 = sbr.rel (%p117) target = $region28
      $region27: #{tpu_custom_call.1} parent=5 // pred_region
        %s121 = ssub.s32 %s11, 1
        %s122 = smul.u32 8, %s16
        %p123 = scmp.lt.s32.totalorder %s122, 15
        %s124 = scalar_select %p123, %s122, 15
        %s125 = smul.addr %s124, 8
        %s126 = scalar_lea.vmem %s0, %s125
        %p127 = pneg %p37
        %p128 = pneg %p34
        %p129 = pneg %p58
        %p130 = pneg %p55
        %p131 = pneg %p84
        %p132 = pneg %p81
        %s133 = sand.u32 %s71, 1
        %s134 = scalar_lea.sflag [#allocation3], %s133
        %s135 = sand.u32 %s71, 1
        %s136 = smul.addr %s135, 64
        %s137 = scalar_lea.vmem [#allocation2], %s136
        %s138 = smul.u32 8, %s16
        %p139 = scmp.lt.s32.totalorder %s138, 15
        %s140 = scalar_select %p139, %s138, 15
        %s141 = smul.addr %s140, 8
        %s142 = scalar_lea.vmem %s0, %s141
        %s143 = smul.u32 8, %s16
        %s144 = smul.u32 8, %s16
        %v145 = vld [vmem:[%s142] sm:$0xff]
        %v146 = vld [vmem:[%s142 + $0x8] sm:$0xff]
        %v147 = vld [vmem:[%s142 + $0x10] sm:$0xff]
        %v148 = vld [vmem:[%s142 + $0x18] sm:$0xff]
        %v149 = vld [vmem:[%s142 + $0x20] sm:$0xff]
        %v150 = vld [vmem:[%s142 + $0x28] sm:$0xff]
        %v151 = vld [vmem:[%s142 + $0x30] sm:$0xff]
        %v152 = vld [vmem:[%s142 + $0x38] sm:$0xff]
        %v153 = vld [vmem:[%s1] sm:$0xff]
        %v154 = vld [vmem:[%s1 + $0x8] sm:$0xff]
        %v155 = vld [vmem:[%s1 + $0x10] sm:$0xff]
        %v156 = vld [vmem:[%s1 + $0x18] sm:$0xff]
        %v157 = vld [vmem:[%s1 + $0x20] sm:$0xff]
        %v158 = vld [vmem:[%s1 + $0x28] sm:$0xff]
        %v159 = vld [vmem:[%s1 + $0x30] sm:$0xff]
        %v160 = vld [vmem:[%s1 + $0x38] sm:$0xff]
        %vm161 = vcmask 523264
        %v163 = vsel %vm161, %v145, 0
        %v166 = vsel %vm161, %v146, 0
        %v169 = vsel %vm161, %v147, 0
        %v172 = vsel %vm161, %v148, 0
        %v175 = vsel %vm161, %v149, 0
        %v178 = vsel %vm161, %v150, 0
        %v181 = vsel %vm161, %v151, 0
        %v184 = vsel %vm161, %v152, 0
        %186 = vmatprep.subr.mxu0 0.0
        %187 = vmatpush1.msra.mxu0 0.0
        %188 = vmatprep.subr.mxu0 0.0
        %189 = vmatpush1.msra.mxu0 0.0
        %190 = vmatprep.subr.mxu0 0.0
        %191 = vmatpush1.msra.mxu0 0.0
        %192 = vmatprep.subr.mxu0 0.0
        %193 = vmatpush1.msra.mxu0 0.0
        %194 = vmatprep.subr.mxu0 0.0
        %195 = vmatpush1.msra.mxu0 0.0
        %196 = vmatprep.subr.mxu0 0.0
        %197 = vmatpush1.msra.mxu0 0.0
        %198 = vmatprep.subr.mxu0 0.0
        %199 = vmatpush1.msra.mxu0 0.0
        %200 = vmatprep.subr.mxu0 0.0
        %201 = vmatpush1.msra.mxu0 0.0
        %202 = vmatprep.subr.mxu0 0.0
        %203 = vmatpush1.msra.mxu0 %v160
        %204 = vmatprep.subr.mxu0 0.0
        %205 = vmatpush1.msra.mxu0 %v159
        %206 = vmatprep.subr.mxu0 0.0
        %207 = vmatpush1.msra.mxu0 %v158
        %208 = vmatprep.subr.mxu0 0.0
        %209 = vmatpush1.msra.mxu0 %v157
        %210 = vmatprep.subr.mxu0 0.0
        %211 = vmatpush1.msra.mxu0 %v156
        %212 = vmatprep.subr.mxu0 0.0
        %213 = vmatpush1.msra.mxu0 %v155
        %214 = vmatprep.subr.mxu0 0.0
        %215 = vmatpush1.msra.mxu0 %v154
        %216 = vmatprep.subr.mxu0 0.0
        %217 = vmatpush1.msra.mxu0 %v153
        %218 = vmatprep.subr.mxu0 0.0
        %219 = vmatpush2.msra.mxu0 0.0
        %220 = vmatprep.subr.mxu0 0.0
        %221 = vmatpush2.msra.mxu0 0.0
        %222 = vmatprep.subr.mxu0 0.0
        %223 = vmatpush2.msra.mxu0 0.0
        %224 = vmatprep.subr.mxu0 0.0
        %225 = vmatpush2.msra.mxu0 0.0
        %226 = vmatprep.subr.mxu0 0.0
        %227 = vmatpush2.msra.mxu0 0.0
        %228 = vmatprep.subr.mxu0 0.0
        %229 = vmatpush2.msra.mxu0 0.0
        %230 = vmatprep.subr.mxu0 0.0
        %231 = vmatpush2.msra.mxu0 0.0
        %232 = vmatprep.subr.mxu0 0.0
        %233 = vmatpush2.msra.mxu0 0.0
        %234 = vmatprep.subr.mxu0 0.0
        %235 = vmatpush2.msra.mxu0 0.0
        %236 = vmatprep.subr.mxu0 0.0
        %237 = vmatpush2.msra.mxu0 0.0
        %238 = vmatprep.subr.mxu0 0.0
        %239 = vmatpush2.msra.mxu0 0.0
        %240 = vmatprep.subr.mxu0 0.0
        %241 = vmatpush2.msra.mxu0 0.0
        %242 = vmatprep.subr.mxu0 0.0
        %243 = vmatpush2.msra.mxu0 0.0
        %244 = vmatprep.subr.mxu0 0.0
        %245 = vmatpush2.msra.mxu0 0.0
        %246 = vmatprep.subr.mxu0 0.0
        %247 = vmatpush2.msra.mxu0 0.0
        %248 = vmatprep.subr.mxu0 0.0
        %249 = vmatpush2.msra.mxu0 0.0
        %250 = vmatprep.mubr.f32.mxu0 0.0
        %251 = vmatmul.mubr.f32.gmra.mxu0 %v163
        %v252 = vpop.f32.mrf.mxu0
        %v253 = vadd.f32 0.0, %v252
        %v254 = vpop.f32.mrf.mxu0
        %255 = vmatprep.mubr.f32.mxu0 0.0
        %256 = vmatmul.mubr.f32.gmra.mxu0 %v166
        %v257 = vpop.f32.mrf.mxu0
        %v258 = vadd.f32 0.0, %v257
        %v259 = vpop.f32.mrf.mxu0
        %260 = vmatprep.mubr.f32.mxu0 0.0
        %261 = vmatmul.mubr.f32.gmra.mxu0 %v169
        %v262 = vpop.f32.mrf.mxu0
        %v263 = vadd.f32 0.0, %v262
        %v264 = vpop.f32.mrf.mxu0
        %265 = vmatprep.mubr.f32.mxu0 0.0
        %266 = vmatmul.mubr.f32.gmra.mxu0 %v172
        %v267 = vpop.f32.mrf.mxu0
        %v268 = vadd.f32 0.0, %v267
        %v269 = vpop.f32.mrf.mxu0
        %270 = vmatprep.mubr.f32.mxu0 0.0
        %271 = vmatmul.mubr.f32.gmra.mxu0 %v175
        %v272 = vpop.f32.mrf.mxu0
        %v273 = vadd.f32 0.0, %v272
        %v274 = vpop.f32.mrf.mxu0
        %275 = vmatprep.mubr.f32.mxu0 0.0
        %276 = vmatmul.mubr.f32.gmra.mxu0 %v178
        %v277 = vpop.f32.mrf.mxu0
        %v278 = vadd.f32 0.0, %v277
        %v279 = vpop.f32.mrf.mxu0
        %280 = vmatprep.mubr.f32.mxu0 0.0
        %281 = vmatmul.mubr.f32.gmra.mxu0 %v181
        %v282 = vpop.f32.mrf.mxu0
        %v283 = vadd.f32 0.0, %v282
        %v284 = vpop.f32.mrf.mxu0
        %285 = vmatprep.mubr.f32.mxu0 0.0
        %286 = vmatmul.mubr.f32.gmra.mxu0 %v184
        %v287 = vpop.f32.mrf.mxu0
        %v288 = vadd.f32 0.0, %v287
        %v289 = vpop.f32.mrf.mxu0
        %290 = vdwg.mxu0
        %291 = vst [vmem:[%s137] sm:$0xff] %v253
        %292 = vst [vmem:[%s137 + $0x8] sm:$0xff] %v258
        %293 = vst [vmem:[%s137 + $0x10] sm:$0xff] %v263
        %294 = vst [vmem:[%s137 + $0x18] sm:$0xff] %v268
        %295 = vst [vmem:[%s137 + $0x20] sm:$0xff] %v273
        %296 = vst [vmem:[%s137 + $0x28] sm:$0xff] %v278
        %297 = vst [vmem:[%s137 + $0x30] sm:$0xff] %v283
        %298 = vst [vmem:[%s137 + $0x38] sm:$0xff] %v288
        %s299 = sand.u32 %s71, 1
        %s300 = scalar_lea.sflag [#allocation3], %s299
        %s301 = sand.u32 %s71, 1
        %s302 = smul.addr %s301, 64
        %s303 = scalar_lea.vmem [#allocation2], %s302
        // Predicated region
        $region29: #{tpu_custom_call.1} parent=27 // pred_check
          %p304 = pneg %p81
        $region30: #{tpu_custom_call.1} parent=27 // pred_check_branch
          %306 = sbr.rel (%p304) target = $region32
        $region31: #{tpu_custom_call.1} parent=27 // pred_region
          %s307 = smul.u32 8, %s16
          %s309 = ssub.s32 1024, 1024
          %310 = vsyncadd %s300, %s309
          %s311 = smul.addr %s307, 128
          %s312 = scalar_lea.hbm %s2, %s311
          %s313 = sshll.u32 %s303, 4
          %s314 = int_to_ptr.vmem [resolvable:$true] %s313
          %319 = dma.vmem_to_hbm [thread:$0]  %s314, 1024, %s312, %s300, 128, 128, 8
        $region32: #{tpu_custom_call.1} parent=27 // pred_fallthru
          _
      $region28: #{tpu_custom_call.1} parent=5 // pred_fallthru
        _
      %p320 = scmp.le.s32.totalorder 2, %s11
      // Predicated region
      $region33: #{tpu_custom_call.1} parent=5 // pred_check
        %p321 = pneg %p320
      $region34: #{tpu_custom_call.1} parent=5 // pred_check_branch
        %323 = sbr.rel (%p321) target = $region36
      $region35: #{tpu_custom_call.1} parent=5 // pred_region
        %s324 = ssub.s32 %s11, 2
        // Predicated region
        $region37: #{tpu_custom_call.1} parent=35 // pred_check
          %p325 = pneg %p87
        $region38: #{tpu_custom_call.1} parent=35 // pred_check_branch
          %327 = sbr.rel (%p325) target = $region40
        $region39: #{tpu_custom_call.1} parent=35 // pred_region
          %s328 = sand.u32 %s72, 1
          %s329 = scalar_lea.sflag [#allocation3], %s328
          %s330 = sand.u32 %s72, 1
          %s331 = smul.addr %s330, 64
          %s332 = scalar_lea.vmem [#allocation2], %s331
          %333 = dma.done %s329, 1024
        $region40: #{tpu_custom_call.1} parent=35 // pred_fallthru
          _
      $region36: #{tpu_custom_call.1} parent=5 // pred_fallthru
        _
    $region6: #{tpu_custom_call.1} parent=1 // loop_footer
      %s15 = sadd.s32 1, %s11
    $region7: #{tpu_custom_call.1} parent=1 // loop_footer_branch
      %10 = sbr.rel target = $region3
    $region8: #{tpu_custom_call.1} parent=1 // loop_exit
      _
    %334 = vsyncpa [#allocation3], 1
    %s335 = scalar_lea.sflag [#allocation3], 1
    %336 = vsyncpa %s335, 1

</llo_original>
